<compile_context>
chip_gen: v7x
topology: tpu7x:2x2x1
jax: 0.10.0
libtpu: 0.0.40
codegen_flags: <defaults>
</compile_context>

<pallas_src>
import functools

import jax
import jax.numpy as jnp
from jax import lax
from jax.experimental import pallas as pl
from jax.experimental.pallas import tpu as pltpu

NEG_SLOPE = 0.01  # F.leaky_relu default
LANES = 128       # TPU lane width


def _leaky_relu(x):
    # max(x, a*x) == leaky_relu for 0 < a < 1: mul+max (2 VPU ops) instead of
    # cmp+mul+select (3 VPU ops).
    return jnp.maximum(x, NEG_SLOPE * x)


def _round_up(x, m):
    return (x + m - 1) // m * m


def _fused_mlp_kernel(x_ref, fw_ref, hw_ref, ow_ref, b_ref, o_ref, acc_ref, *,
                      n_hidden, nonlinear, compute_dtype):
    """Grid = (M tiles [parallel], K tiles of d_in [arbitrary]).

    Each K step accumulates a partial first-layer product into the f32 VMEM
    scratch; on the last K step the accumulator is activated and the whole
    rest of the network (hidden stack + final layer + bias) runs with the
    activations resident in VMEM/vregs — nothing round-trips through HBM.
    """
    k = pl.program_id(1)

    @pl.when(k == 0)
    def _():
        acc_ref[...] = jnp.zeros_like(acc_ref)

    # First layer partial product for this K tile (f32 accumulation on MXU).
    acc_ref[...] += jnp.dot(x_ref[...].astype(compute_dtype),
                            fw_ref[...].astype(compute_dtype),
                            preferred_element_type=jnp.float32)

    @pl.when(k == pl.num_programs(1) - 1)
    def _():
        h = _leaky_relu(acc_ref[...]).astype(compute_dtype)

        def hidden_step(_, h):
            # Read the shared hidden weight from its VMEM-resident ref inside
            # the loop body (no multi-MiB hoisted live value across the whole
            # unrolled network -> flat vreg pressure).
            hh = jnp.dot(h, hw_ref[...].astype(compute_dtype),
                         preferred_element_type=jnp.float32)
            if nonlinear:
                # f32 activation math (safe on v5e, which has no bf16 VPU).
                hh = _leaky_relu(hh)
            return hh.astype(compute_dtype)

        if n_hidden > 0:
            if n_hidden <= 8:
                for i in range(n_hidden):
                    h = hidden_step(i, h)
            else:
                h = lax.fori_loop(0, n_hidden, hidden_step, h, unroll=True)

        # Final layer with fused bias epilogue; output slab is lane-dense.
        y = jnp.dot(h, ow_ref[...].astype(compute_dtype),
                    preferred_element_type=jnp.float32)
        y = y + b_ref[...]  # (1, N) broadcast rides a spare VPU slot
        o_ref[...] = y.astype(o_ref.dtype)


def net_forward(params, x, *, depth, size, nonlinear=False,
                compute_dtype=jnp.float32):
    """Forward pass of Net as one fused Pallas kernel. x: (B, 3, size, size)."""
    B = x.shape[0]
    d_in = 3 * size * size
    d_hid = params["first_w"].shape[1]
    num_classes = params["final_w"].shape[1]
    n_hidden = depth - 1

    o = x.reshape(B, d_in).astype(jnp.float32)

    elt = jnp.dtype(compute_dtype).itemsize
    m_mult = 16 if elt == 2 else 8

    # ---- Lane/sublane-aligned padded problem dims --------------------------
    d_in_p = _round_up(d_in, LANES)
    d_hid_p = _round_up(d_hid, LANES)
    N = max(_round_up(num_classes, LANES), LANES)

    # M tiling (batch rows). "parallel" grid axis -> both TCs used on v7x.
    if B <= 256:
        tm = max(_round_up(B, m_mult), m_mult)
        M = tm
    else:
        tm = 256
        M = _round_up(B, tm)
    grid_m = M // tm

    # K tiling over the first matmul's d_in reduction ("arbitrary" axis):
    # pipelines first_w HBM streaming with MXU compute.
    tk = d_in_p
    for cand in (512, 256, 128):
        if d_in_p % cand == 0 and d_in_p // cand >= 2:
            tk = cand
            break
    grid_k = d_in_p // tk

    # ---- Zero padding (semantically inert: padded rows/cols are zero) ------
    if (M, d_in_p) != (B, d_in):
        o = jnp.pad(o, ((0, M - B), (0, d_in_p - d_in)))
    fw = jnp.pad(params["first_w"],
                 ((0, d_in_p - d_in), (0, d_hid_p - d_hid)))
    hw = jnp.pad(params["hidden_w"],
                 ((0, d_hid_p - d_hid), (0, d_hid_p - d_hid)))
    ow = jnp.pad(params["final_w"],
                 ((0, d_hid_p - d_hid), (0, N - num_classes)))
    b2d = jnp.pad(params["final_b"],
                  (0, N - num_classes)).reshape(1, N).astype(jnp.float32)

    # Stream operands in the MXU compute dtype (bf16 halves weight HBM bytes);
    # bias stays f32.  TODO(synk): add an int8 weight path (f32 scales in the
    # epilogue) for v5e/v6e; v7x's MXU has no integer datapath, keep bf16 there.
    o_c = o.astype(compute_dtype)
    fw_c = fw.astype(compute_dtype)
    hw_c = hw.astype(compute_dtype)
    ow_c = ow.astype(compute_dtype)

    # ---- Generation-aware VMEM budget ---------------------------------------
    try:
        phys_vmem = int(pltpu.get_tpu_info().vmem_capacity_bytes)
    except Exception:
        phys_vmem = 64 << 20  # conservative fallback = v7x per-TC capacity
    budget = int(phys_vmem * 0.85)

    # Estimate with 2x buffering per pipelined input + accumulator scratch +
    # live f32/compute-dtype activation working set.
    vmem_est = (
        2 * elt * (tm * tk + tk * d_hid_p + d_hid_p * d_hid_p + d_hid_p * N)
        + 2 * 4 * N                        # bias
        + 2 * 4 * tm * N                   # output block
        + 4 * tm * d_hid_p                 # f32 accumulator scratch
        + (4 + elt) * 2 * tm * d_hid_p     # live activations
    )
    assert vmem_est <= budget, (
        f"fused kernel wants ~{vmem_est / 2**20:.1f} MiB VMEM, budget is "
        f"{budget / 2**20:.1f} MiB; shrink tm/tk or add d_hid tiling")
    # TODO(synk): tile d_hid as well (hidden weight blocked over N/K) for
    # configs whose shared hidden weight alone exceeds the per-TC budget
    # (especially v7x's 64 MiB VMEM).
    vmem_limit = int(min(budget, max(2 * vmem_est + (4 << 20), 32 << 20)))

    flops = 2 * M * (d_in_p * d_hid_p
                     + n_hidden * d_hid_p * d_hid_p
                     + d_hid_p * N)
    bytes_accessed = (elt * (M * d_in_p + d_in_p * d_hid_p
                             + d_hid_p * d_hid_p + d_hid_p * N)
                      + 4 * (N + M * N))

    kernel = functools.partial(
        _fused_mlp_kernel, n_hidden=n_hidden, nonlinear=nonlinear,
        compute_dtype=compute_dtype)

    out = pl.pallas_call(
        kernel,
        out_shape=jax.ShapeDtypeStruct((M, N), jnp.float32),
        grid_spec=pltpu.PrefetchScalarGridSpec(
            num_scalar_prefetch=0,
            grid=(grid_m, grid_k),
            in_specs=[
                pl.BlockSpec((tm, tk), lambda i, k: (i, k)),          # x
                pl.BlockSpec((tk, d_hid_p), lambda i, k: (k, 0)),     # first_w
                pl.BlockSpec((d_hid_p, d_hid_p), lambda i, k: (0, 0)),  # hidden_w (shared)
                pl.BlockSpec((d_hid_p, N), lambda i, k: (0, 0)),      # final_w
                pl.BlockSpec((1, N), lambda i, k: (0, 0)),            # final_b
            ],
            out_specs=pl.BlockSpec((tm, N), lambda i, k: (i, 0)),
            scratch_shapes=[pltpu.VMEM((tm, d_hid_p), jnp.float32)],
        ),
        compiler_params=pltpu.CompilerParams(
            dimension_semantics=("parallel", "arbitrary"),
            vmem_limit_bytes=vmem_limit),
        cost_estimate=pl.CostEstimate(
            flops=flops, transcendentals=0, bytes_accessed=bytes_accessed),
    )(o_c, fw_c, hw_c, ow_c, b2d)

    return out[:B, :num_classes]


def init_params(key, depth, size, width, num_classes):
    """Deterministic Kaiming-normal init matching the torch module's shapes.

    Weights are stored transposed relative to torch, i.e. (in, out). The torch
    module deepcopies the SAME initialized hidden Linear, so the depth-1 hidden
    layers all share identical weights -> store the hidden weight once."""
    d_in = 3 * size * size
    d_hid = width * size * size

    def kaiming(k, fan_in, fan_out, a):
        gain = (2.0 / (1.0 + a * a)) ** 0.5
        std = gain / (fan_in ** 0.5)
        return std * jax.random.normal(k, (fan_in, fan_out), dtype=jnp.float32)

    keys = jax.random.split(key, 4)
    bound = 1.0 / (d_hid ** 0.5)
    return {
        # first_layer: Linear(d_in, d_hid, bias=False), kaiming a=0.01 (leaky_relu)
        "first_w": kaiming(keys[0], d_in, d_hid, a=0.01),
        # hidden layer weight (shared by all depth-1 layers via deepcopy)
        "hidden_w": kaiming(keys[1], d_hid, d_hid, a=0.01),
        # final_layer: Linear(d_hid, num_classes) with bias; nonlinearity='linear'
        "final_w": (1.0 / (d_hid ** 0.5)) * jax.random.normal(
            keys[2], (d_hid, num_classes), dtype=jnp.float32),
        "final_b": jax.random.uniform(
            keys[3], (num_classes,), minval=-bound, maxval=bound,
            dtype=jnp.float32),
    }


def _ref_forward(params, x, *, depth, size, nonlinear):
    """Plain-JAX reference (f32), same math as the torch module."""
    o = x.reshape(-1, 3 * size * size)
    o = o @ params["first_w"]
    o = jnp.where(o > 0, o, NEG_SLOPE * o)
    for _ in range(depth - 1):
        o = o @ params["hidden_w"]
        if nonlinear:
            o = jnp.where(o > 0, o, NEG_SLOPE * o)
    return o @ params["final_w"] + params["final_b"]


if __name__ == "__main__":
    key = jax.random.PRNGKey(0)

    # Config 1: small, matches the module defaults (depth=3, size=8, width=2).
    # d_in = 192 -> padded 256 with tk=128 => exercises the K-accumulation path.
    depth, size, width, num_classes = 3, 8, 2, 2
    batch = 2
    nonlinear = False
    kx, kp, kx2, kp2 = jax.random.split(key, 4)
    x = jax.random.normal(kx, (batch, 3, size, size), dtype=jnp.float32)
    params = init_params(kp, depth, size, width, num_classes)
    ref = _ref_forward(params, x, depth=depth, size=size, nonlinear=nonlinear)

    out_f32 = net_forward(params, x, depth=depth, size=size,
                          nonlinear=nonlinear, compute_dtype=jnp.float32)
    out_f32 = jax.block_until_ready(out_f32)
    assert out_f32.shape == (batch, num_classes)
    assert jnp.allclose(out_f32, ref, atol=1e-4, rtol=1e-4)

    # bf16 MXU streaming path (f32 accumulation) — looser tolerance.
    out_bf16 = net_forward(params, x, depth=depth, size=size,
                           nonlinear=nonlinear, compute_dtype=jnp.bfloat16)
    out_bf16 = jax.block_until_ready(out_bf16)
    assert out_bf16.shape == (batch, num_classes)
    assert jnp.allclose(out_bf16, ref, atol=1.5e-1, rtol=1e-1)

    # Config 2: larger batch (grid_m > 1, parallel M axis) + nonlinear hidden
    # stack (depth=5) to exercise the multi-tile and activation paths.
    depth2, size2, width2, num_classes2 = 5, 8, 2, 2
    batch2 = 300
    x2 = jax.random.normal(kx2, (batch2, 3, size2, size2), dtype=jnp.float32)
    params2 = init_params(kp2, depth2, size2, width2, num_classes2)
    ref2 = _ref_forward(params2, x2, depth=depth2, size=size2, nonlinear=True)

    out2 = net_forward(params2, x2, depth=depth2, size=size2,
                       nonlinear=True, compute_dtype=jnp.float32)
    out2 = jax.block_until_ready(out2)
    assert out2.shape == (batch2, num_classes2)
    assert jnp.allclose(out2, ref2, atol=1e-3, rtol=1e-3)

    print("KERNEL_OK")
</pallas_src>

<mosaic_0001>
module attributes {stable_mosaic.version = 11 : i64} {
  func.func @_fused_mlp_kernel(%arg0: i32, %arg1: i32, %arg2: memref<8x128xf32, #tpu.memory_space<vmem>>, %arg3: memref<128x128xf32, #tpu.memory_space<vmem>>, %arg4: memref<128x128xf32, #tpu.memory_space<vmem>>, %arg5: memref<128x128xf32, #tpu.memory_space<vmem>>, %arg6: memref<1x128xf32, #tpu.memory_space<vmem>>, %arg7: memref<8x128xf32, #tpu.memory_space<vmem>>, %arg8: memref<8x128xf32, #tpu.memory_space<vmem>>) attributes {dimension_semantics = [#tpu.dimension_semantics<parallel>, #tpu.dimension_semantics<arbitrary>], iteration_bounds = array<i64: 1, 2>, scalar_prefetch = 0 : i64, scratch_operands = 1 : i64, tpu.core_type = #tpu.core_type<tc>, window_params = [{transform_indices = @transform_0, window_bounds = array<i64: 8, 128>}, {transform_indices = @transform_1, window_bounds = array<i64: 128, 128>}, {pipeline_mode = #tpu.pipeline_mode<synchronous>, transform_indices = @transform_2, window_bounds = array<i64: 128, 128>}, {pipeline_mode = #tpu.pipeline_mode<synchronous>, transform_indices = @transform_3, window_bounds = array<i64: 128, 128>}, {pipeline_mode = #tpu.pipeline_mode<synchronous>, transform_indices = @transform_4, window_bounds = array<i64: 1, 128>}, {transform_indices = @transform_5, window_bounds = array<i64: 8, 128>}]} {
    %c0_i32 = arith.constant 0 : i32
    %0 = arith.cmpi eq, %arg1, %c0_i32 : i32
    %1 = arith.extui %0 : i1 to i32
    %c0_i32_0 = arith.constant 0 : i32
    %2 = arith.cmpi ne, %1, %c0_i32_0 : i32
    scf.if %2 {
      %cst_9 = arith.constant 0.000000e+00 : f32
      %12 = vector.broadcast %cst_9 : f32 to vector<8x128xf32>
      %c0_10 = arith.constant 0 : index
      %c0_11 = arith.constant 0 : index
      %13 = vector.load %arg8[%c0_10, %c0_11] : memref<8x128xf32, #tpu.memory_space<vmem>>, vector<8x128xf32>
      tpu.vector_store %arg8[%c0_10, %c0_11], %12 {strides = array<i32>} : memref<8x128xf32, #tpu.memory_space<vmem>>, vector<8x128xf32>,
    } else {
    }
    %c0 = arith.constant 0 : index
    %c0_1 = arith.constant 0 : index
    %3 = vector.load %arg8[%c0, %c0_1] : memref<8x128xf32, #tpu.memory_space<vmem>>, vector<8x128xf32>
    %c0_2 = arith.constant 0 : index
    %c0_3 = arith.constant 0 : index
    %4 = vector.load %arg2[%c0_2, %c0_3] : memref<8x128xf32, #tpu.memory_space<vmem>>, vector<8x128xf32>
    %c0_4 = arith.constant 0 : index
    %c0_5 = arith.constant 0 : index
    %5 = vector.load %arg3[%c0_4, %c0_5] : memref<128x128xf32, #tpu.memory_space<vmem>>, vector<128x128xf32>
    %cst = arith.constant dense<0.000000e+00> : vector<8x128xf32>
    %6 = tpu.matmul %4, %5, %cst {dimension_numbers = #tpu.dot_dimension_numbers<[1], [0], [0], [1], [0, 0, 1, 1], [], []>} : vector<8x128xf32>, vector<128x128xf32>, vector<8x128xf32> -> vector<8x128xf32>
    %7 = arith.addf %3, %6 : vector<8x128xf32>
    %c0_6 = arith.constant 0 : index
    %c0_7 = arith.constant 0 : index
    %8 = vector.load %arg8[%c0_6, %c0_7] : memref<8x128xf32, #tpu.memory_space<vmem>>, vector<8x128xf32>
    tpu.vector_store %arg8[%c0_6, %c0_7], %7 {strides = array<i32>} : memref<8x128xf32, #tpu.memory_space<vmem>>, vector<8x128xf32>,
    %c1_i32 = arith.constant 1 : i32
    %9 = arith.cmpi eq, %arg1, %c1_i32 : i32
    %10 = arith.extui %9 : i1 to i32
    %c0_i32_8 = arith.constant 0 : i32
    %11 = arith.cmpi ne, %10, %c0_i32_8 : i32
    scf.if %11 {
      %c0_9 = arith.constant 0 : index
      %c0_10 = arith.constant 0 : index
      %12 = vector.load %arg8[%c0_9, %c0_10] : memref<8x128xf32, #tpu.memory_space<vmem>>, vector<8x128xf32>
      %cst_11 = arith.constant 0.00999999977 : f32
      %13 = vector.broadcast %cst_11 : f32 to vector<8x128xf32>
      %14 = arith.mulf %13, %12 : vector<8x128xf32>
      %15 = arith.maximumf %12, %14 : vector<8x128xf32>
      %c0_12 = arith.constant 0 : index
      %c0_13 = arith.constant 0 : index
      %16 = vector.load %arg4[%c0_12, %c0_13] : memref<128x128xf32, #tpu.memory_space<vmem>>, vector<128x128xf32>
      %cst_14 = arith.constant dense<0.000000e+00> : vector<8x128xf32>
      %17 = tpu.matmul %15, %16, %cst_14 {dimension_numbers = #tpu.dot_dimension_numbers<[1], [0], [0], [1], [0, 0, 1, 1], [], []>} : vector<8x128xf32>, vector<128x128xf32>, vector<8x128xf32> -> vector<8x128xf32>
      %c0_15 = arith.constant 0 : index
      %c0_16 = arith.constant 0 : index
      %18 = vector.load %arg4[%c0_15, %c0_16] : memref<128x128xf32, #tpu.memory_space<vmem>>, vector<128x128xf32>
      %cst_17 = arith.constant dense<0.000000e+00> : vector<8x128xf32>
      %19 = tpu.matmul %17, %18, %cst_17 {dimension_numbers = #tpu.dot_dimension_numbers<[1], [0], [0], [1], [0, 0, 1, 1], [], []>} : vector<8x128xf32>, vector<128x128xf32>, vector<8x128xf32> -> vector<8x128xf32>
      %c0_18 = arith.constant 0 : index
      %c0_19 = arith.constant 0 : index
      %20 = vector.load %arg5[%c0_18, %c0_19] : memref<128x128xf32, #tpu.memory_space<vmem>>, vector<128x128xf32>
      %cst_20 = arith.constant dense<0.000000e+00> : vector<8x128xf32>
      %21 = tpu.matmul %19, %20, %cst_20 {dimension_numbers = #tpu.dot_dimension_numbers<[1], [0], [0], [1], [0, 0, 1, 1], [], []>} : vector<8x128xf32>, vector<128x128xf32>, vector<8x128xf32> -> vector<8x128xf32>
      %c0_21 = arith.constant 0 : index
      %c0_22 = arith.constant 0 : index
      %22 = vector.load %arg6[%c0_21, %c0_22] : memref<1x128xf32, #tpu.memory_space<vmem>>, vector<1x128xf32>
      %23 = vector.broadcast %22 : vector<1x128xf32> to vector<8x128xf32>
      %24 = arith.addf %21, %23 : vector<8x128xf32>
      %c0_23 = arith.constant 0 : index
      %c0_24 = arith.constant 0 : index
      %25 = vector.load %arg7[%c0_23, %c0_24] : memref<8x128xf32, #tpu.memory_space<vmem>>, vector<8x128xf32>
      tpu.vector_store %arg7[%c0_23, %c0_24], %24 {strides = array<i32>} : memref<8x128xf32, #tpu.memory_space<vmem>>, vector<8x128xf32>,
    } else {
    }
    return
  }
  func.func @transform_0(%arg0: i32, %arg1: i32) -> (i32, i32) {
    %c0_i32 = arith.constant 0 : i32
    return %arg0, %arg1 : i32, i32
  }
  func.func @transform_1(%arg0: i32, %arg1: i32) -> (i32, i32) {
    %c0_i32 = arith.constant 0 : i32
    %c0_i32_0 = arith.constant 0 : i32
    return %arg1, %c0_i32 : i32, i32
  }
  func.func @transform_2(%arg0: i32, %arg1: i32) -> (i32, i32) {
    %c0_i32 = arith.constant 0 : i32
    %c0_i32_0 = arith.constant 0 : i32
    %c0_i32_1 = arith.constant 0 : i32
    return %c0_i32, %c0_i32_0 : i32, i32
  }
  func.func @transform_3(%arg0: i32, %arg1: i32) -> (i32, i32) {
    %c0_i32 = arith.constant 0 : i32
    %c0_i32_0 = arith.constant 0 : i32
    %c0_i32_1 = arith.constant 0 : i32
    return %c0_i32, %c0_i32_0 : i32, i32
  }
  func.func @transform_4(%arg0: i32, %arg1: i32) -> (i32, i32) {
    %c0_i32 = arith.constant 0 : i32
    %c0_i32_0 = arith.constant 0 : i32
    %c0_i32_1 = arith.constant 0 : i32
    return %c0_i32, %c0_i32_0 : i32, i32
  }
  func.func @transform_5(%arg0: i32, %arg1: i32) -> (i32, i32) {
    %c0_i32 = arith.constant 0 : i32
    %c0_i32_0 = arith.constant 0 : i32
    return %arg0, %c0_i32 : i32, i32
  }
}

</mosaic_0001>

<llo_original>
// kernel: tpu_custom_call.1
$region0: #{tpu_custom_call.1}
  #allocation0 [shape = 'u32[]', space=smem, size = 0x4, offset = 0x4, fixed_abs, tag = 'smem constant byte address 0x4 - core index']
  #allocation1 [shape = 'u32[144,128]{1,0:T(1,128)}', space=vmem, size = 0x12000, scoped, tag = 'internal scratch']
  #allocation2 [shape = 'f32[8,128]{1,0:T(8,128)}', space=vmem, size = 0x1000, scoped, tag = 'scratch operand']
  %s0 = inlined_call_operand.hbm [shape: f32[8,256], index: 0, kind: input, shape index: {}]
  %s1 = inlined_call_operand.hbm [shape: f32[256,128], index: 1, kind: input, shape index: {}]
  %s2 = inlined_call_operand.hbm [shape: f32[128,128], index: 2, kind: input, shape index: {}]
  %s3 = inlined_call_operand.hbm [shape: f32[128,128], index: 3, kind: input, shape index: {}]
  %s4 = inlined_call_operand.vmem [shape: f32[1,128], index: 4, kind: input, shape index: {}]
  %s5 = inlined_call_operand.hbm [shape: f32[8,128], index: 5, kind: output, shape index: {}]
  %s6 = sld [smem:[#allocation0]]
  $region77: #{tpu_custom_call.1} parent=0
    _
  %s8 = ssub.s32 1, %s6
  %s9 = scalar_select 0, %s8, %s6
  $region1: #{tpu_custom_call.1} parent=0
    #allocation3 [shape = 'u8[8192]{0}', space=vmem, size = 0x2000, scoped, tag = 'input window, operand 0']
    #allocation4 [shape = 's32[2]{0}', space=sflag, size = 0x8, scoped, tag = 'scoped memory for tpu_custom_call.1']
    #allocation5 [shape = 's32[2]{0}', space=sflag, size = 0x8, scoped, tag = 'scoped memory for tpu_custom_call.1']
    #allocation6 [shape = 'u8[131072]{0}', space=vmem, size = 0x20000, scoped, tag = 'input window, operand 1']
    #allocation7 [shape = 's32[2]{0}', space=sflag, size = 0x8, scoped, tag = 'scoped memory for tpu_custom_call.1']
    #allocation8 [shape = 'u8[65536]{0}', space=vmem, size = 0x10000, scoped, tag = 'input window, operand 2, single buffered']
    #allocation9 [shape = 'u8[65536]{0}', space=vmem, size = 0x10000, scoped, tag = 'input window, operand 3, single buffered']
    #allocation10 [shape = 's32[1]{0}', space=sflag, size = 0x4, scoped, tag = 'scoped memory for tpu_custom_call.1']
    #allocation11 [shape = 'u8[4096]{0}', space=vmem, size = 0x1000, scoped, tag = 'output window, operand 0, single buffered']
    %10 = vsyncpa [#allocation4], 0
    %s11 = scalar_lea.sflag [#allocation4], 1
    %12 = vsyncpa %s11, 0
    %13 = vsyncpa [#allocation7], 0
    %s14 = scalar_lea.sflag [#allocation7], 1
    %15 = vsyncpa %s14, 0
    %16 = vsyncpa [#allocation10], 0
    %17 = vsyncpa [#allocation5], 0
    loop: start=0, step=1, limit=4
    $region2: #{tpu_custom_call.1} parent=1 // loop_pre_header
      _
    $region3: #{tpu_custom_call.1} parent=1 // loop_header
      %s19 = sphi 0, %s23
      %p20 = scmp.ge.s32.totalorder %s19, 4
      %s26 = sphi 0, %s38
      %s27 = sphi 0, %s34
      %s28 = sphi 0, %s26
      %s29 = sphi 0, %s27
      %s30 = sphi 0, %s28
      %s31 = sphi 0, %s29
      %s43 = sphi 0, %s45
      %s46 = sphi 0, %s43
      %s47 = sphi 0, %s46
      %s63 = sphi 0, %s47
      %s69 = sphi 0, %s71
      %s72 = sphi 0, %s69
      %s73 = sphi 0, %s72
      %s89 = sphi 0, %s73
      %s93 = sphi 0, %s93
      %s95 = sphi 0, %s93
      %s96 = sphi 0, %s95
      %s110 = sphi 0, %s96
      %s114 = sphi 0, %s114
      %s116 = sphi 0, %s114
      %s117 = sphi 0, %s116
      %s131 = sphi 0, %s117
      %s135 = sphi 0, %s135
      %s137 = sphi 0, %s135
      %s138 = sphi 0, %s137
      %s152 = sphi 0, %s138
      %s158 = sphi 0, %s160
      %s161 = sphi 0, %s158
      %s162 = sphi 0, %s161
      %s178 = sphi 0, %s162
    $region4: #{tpu_custom_call.1} parent=1 // loop_header_branch
      %22 = sbr.rel (%p20) target = $region8
    $region5: #{tpu_custom_call.1} parent=1 // loop_body
      %s24 = ssub.s32 %s19, 1
      %s25 = ssub.s32 %s19, 2
      %s32 = sadd.s32 1, %s27
      %p33 = scmp.ge.s32.totalorder %s32, 2
      %s34 = scalar_select %p33, 0, %s32
      %s35 = sadd.s32 1, %s26
      %s36 = scalar_select %p33, %s35, %s26
      %p37 = scmp.ge.s32.totalorder %s36, 1
      %s38 = scalar_select %p37, 0, %s36
      %s39 = ssub.s32 %s26, %s38
      %s40 = ssub.s32 %s27, %s34
      %s41 = sor.u32 %s39, %s40
      %p42 = scmp.eq.s32.totalorder %s41, 0
      %s44 = sadd.s32 %s43, 1
      %s45 = scalar_select %p42, %s43, %s44
      %p48 = pneg %p42
      %p49 = scmp.eq.s32.totalorder %s19, 1
      %p50 = por %p48, %p49
      %p51 = scmp.ne.s32.totalorder %s43, %s46
      %p52 = scmp.eq.s32.totalorder %s19, 0
      %p53 = por %p51, %p52
      %p54 = scmp.ne.s32.totalorder %s43, %s46
      %p55 = scmp.eq.s32.totalorder %s24, 1
      %p56 = por %p54, %p55
      %p57 = scmp.ne.s32.totalorder %s46, %s47
      %p58 = scmp.eq.s32.totalorder %s24, 0
      %p59 = por %p57, %p58
      %p60 = scmp.ne.s32.totalorder %s46, %s47
      %p61 = scmp.eq.s32.totalorder %s25, 1
      %p62 = por %p60, %p61
      %p64 = scmp.ne.s32.totalorder %s47, %s63
      %p65 = scmp.eq.s32.totalorder %s25, 0
      %p66 = por %p64, %p65
      %s67 = ssub.s32 %s27, %s34
      %p68 = scmp.eq.s32.totalorder %s67, 0
      %s70 = sadd.s32 %s69, 1
      %s71 = scalar_select %p68, %s69, %s70
      %p74 = pneg %p68
      %p75 = scmp.eq.s32.totalorder %s19, 1
      %p76 = por %p74, %p75
      %p77 = scmp.ne.s32.totalorder %s69, %s72
      %p78 = scmp.eq.s32.totalorder %s19, 0
      %p79 = por %p77, %p78
      %p80 = scmp.ne.s32.totalorder %s69, %s72
      %p81 = scmp.eq.s32.totalorder %s24, 1
      %p82 = por %p80, %p81
      %p83 = scmp.ne.s32.totalorder %s72, %s73
      %p84 = scmp.eq.s32.totalorder %s24, 0
      %p85 = por %p83, %p84
      %p86 = scmp.ne.s32.totalorder %s72, %s73
      %p87 = scmp.eq.s32.totalorder %s25, 1
      %p88 = por %p86, %p87
      %p90 = scmp.ne.s32.totalorder %s73, %s89
      %p91 = scmp.eq.s32.totalorder %s25, 0
      %p92 = por %p90, %p91
      %s94 = sadd.s32 %s93, 1
      %p97 = scmp.eq.s32.totalorder %s19, 1
      %p98 = scmp.ne.s32.totalorder %s93, %s95
      %p99 = scmp.eq.s32.totalorder %s19, 0
      %p100 = por %p98, %p99
      %p101 = scmp.ne.s32.totalorder %s93, %s95
      %p102 = scmp.eq.s32.totalorder %s24, 1
      %p103 = por %p101, %p102
      %p104 = scmp.ne.s32.totalorder %s95, %s96
      %p105 = scmp.eq.s32.totalorder %s24, 0
      %p106 = por %p104, %p105
      %p107 = scmp.ne.s32.totalorder %s95, %s96
      %p108 = scmp.eq.s32.totalorder %s25, 1
      %p109 = por %p107, %p108
      %p111 = scmp.ne.s32.totalorder %s96, %s110
      %p112 = scmp.eq.s32.totalorder %s25, 0
      %p113 = por %p111, %p112
      %s115 = sadd.s32 %s114, 1
      %p118 = scmp.eq.s32.totalorder %s19, 1
      %p119 = scmp.ne.s32.totalorder %s114, %s116
      %p120 = scmp.eq.s32.totalorder %s19, 0
      %p121 = por %p119, %p120
      %p122 = scmp.ne.s32.totalorder %s114, %s116
      %p123 = scmp.eq.s32.totalorder %s24, 1
      %p124 = por %p122, %p123
      %p125 = scmp.ne.s32.totalorder %s116, %s117
      %p126 = scmp.eq.s32.totalorder %s24, 0
      %p127 = por %p125, %p126
      %p128 = scmp.ne.s32.totalorder %s116, %s117
      %p129 = scmp.eq.s32.totalorder %s25, 1
      %p130 = por %p128, %p129
      %p132 = scmp.ne.s32.totalorder %s117, %s131
      %p133 = scmp.eq.s32.totalorder %s25, 0
      %p134 = por %p132, %p133
      %s136 = sadd.s32 %s135, 1
      %p139 = scmp.eq.s32.totalorder %s19, 1
      %p140 = scmp.ne.s32.totalorder %s135, %s137
      %p141 = scmp.eq.s32.totalorder %s19, 0
      %p142 = por %p140, %p141
      %p143 = scmp.ne.s32.totalorder %s135, %s137
      %p144 = scmp.eq.s32.totalorder %s24, 1
      %p145 = por %p143, %p144
      %p146 = scmp.ne.s32.totalorder %s137, %s138
      %p147 = scmp.eq.s32.totalorder %s24, 0
      %p148 = por %p146, %p147
      %p149 = scmp.ne.s32.totalorder %s137, %s138
      %p150 = scmp.eq.s32.totalorder %s25, 1
      %p151 = por %p149, %p150
      %p153 = scmp.ne.s32.totalorder %s138, %s152
      %p154 = scmp.eq.s32.totalorder %s25, 0
      %p155 = por %p153, %p154
      %s156 = ssub.s32 %s26, %s38
      %p157 = scmp.eq.s32.totalorder %s156, 0
      %s159 = sadd.s32 %s158, 1
      %s160 = scalar_select %p157, %s158, %s159
      %p163 = pneg %p157
      %p164 = scmp.eq.s32.totalorder %s19, 1
      %p165 = por %p163, %p164
      %p166 = scmp.ne.s32.totalorder %s158, %s161
      %p167 = scmp.eq.s32.totalorder %s19, 0
      %p168 = por %p166, %p167
      %p169 = scmp.ne.s32.totalorder %s158, %s161
      %p170 = scmp.eq.s32.totalorder %s24, 1
      %p171 = por %p169, %p170
      %p172 = scmp.ne.s32.totalorder %s161, %s162
      %p173 = scmp.eq.s32.totalorder %s24, 0
      %p174 = por %p172, %p173
      %p175 = scmp.ne.s32.totalorder %s161, %s162
      %p176 = scmp.eq.s32.totalorder %s25, 1
      %p177 = por %p175, %p176
      %p179 = scmp.ne.s32.totalorder %s162, %s178
      %p180 = scmp.eq.s32.totalorder %s25, 0
      %p181 = por %p179, %p180
      %p182 = scmp.le.s32.totalorder 1, %s19
      %p183 = scmp.lt.s32.totalorder %s19, 3
      %p184 = pnand %p182, %p183
      %p185 = pneg %p184
      // Predicated region
      $region9: #{tpu_custom_call.1} parent=5 // pred_check
        _
      $region10: #{tpu_custom_call.1} parent=5 // pred_check_branch
        %187 = sbr.rel (%p184) target = $region12
      $region11: #{tpu_custom_call.1} parent=5 // pred_region
        %s188 = ssub.s32 %s19, 1
        // Predicated region
        $region13: #{tpu_custom_call.1} parent=11 // pred_check
          %p189 = pneg %p106
        $region14: #{tpu_custom_call.1} parent=11 // pred_check_branch
          %191 = sbr.rel (%p189) target = $region16
        $region15: #{tpu_custom_call.1} parent=11 // pred_region
          %s193 = ssub.s32 2048, 2048
          %194 = vsyncadd [#allocation7], %s193
          %s195 = sshll.u32 [#allocation8], 4
          %s196 = int_to_ptr.vmem [resolvable:$true] %s195
          %201 = dma.hbm_to_vmem [thread:$0]  %s2, 2048, %s196, [#allocation7], 128, 128, 8
        $region16: #{tpu_custom_call.1} parent=11 // pred_fallthru
          _
        // Predicated region
        $region17: #{tpu_custom_call.1} parent=11 // pred_check
          %p202 = pneg %p127
        $region18: #{tpu_custom_call.1} parent=11 // pred_check_branch
          %204 = sbr.rel (%p202) target = $region20
        $region19: #{tpu_custom_call.1} parent=11 // pred_region
          %s206 = ssub.s32 2048, 2048
          %207 = vsyncadd [#allocation10], %s206
          %s208 = sshll.u32 [#allocation9], 4
          %s209 = int_to_ptr.vmem [resolvable:$true] %s208
          %214 = dma.hbm_to_vmem [thread:$0]  %s3, 2048, %s209, [#allocation10], 128, 128, 8
        $region20: #{tpu_custom_call.1} parent=11 // pred_fallthru
          _
        // Predicated region
        $region21: #{tpu_custom_call.1} parent=11 // pred_check
          %p215 = pneg %p148
        $region22: #{tpu_custom_call.1} parent=11 // pred_check_branch
          %217 = sbr.rel (%p215) target = $region24
        $region23: #{tpu_custom_call.1} parent=11 // pred_region
          _
        $region24: #{tpu_custom_call.1} parent=11 // pred_fallthru
          _
      $region12: #{tpu_custom_call.1} parent=5 // pred_fallthru
        _
      %p218 = scmp.lt.s32.totalorder %s19, 2
      // Predicated region
      $region25: #{tpu_custom_call.1} parent=5 // pred_check
        %p219 = pneg %p218
      $region26: #{tpu_custom_call.1} parent=5 // pred_check_branch
        %221 = sbr.rel (%p219) target = $region28
      $region27: #{tpu_custom_call.1} parent=5 // pred_region
        // Predicated region
        $region29: #{tpu_custom_call.1} parent=27 // pred_check
          %p222 = pneg %p53
        $region30: #{tpu_custom_call.1} parent=27 // pred_check_branch
          %224 = sbr.rel (%p222) target = $region32
        $region31: #{tpu_custom_call.1} parent=27 // pred_region
          %s225 = sand.u32 %s43, 1
          %s226 = scalar_lea.sflag [#allocation4], %s225
          %s227 = sand.u32 %s43, 1
          %s228 = smul.addr %s227, 8
          %s229 = scalar_lea.vmem [#allocation3], %s228
          %s231 = ssub.s32 128, 128
          %232 = vsyncadd %s226, %s231
          %s233 = smul.addr %s26, 2
          %s234 = sadd.s32 %s27, %s233
          %s235 = smul.addr %s234, 128
          %s236 = scalar_lea.hbm %s0, %s235
          %s238 = sshll.u32 %s229, 4
          %s239 = int_to_ptr.vmem [resolvable:$true] %s238
          %241 = dma.hbm_to_vmem [thread:$0]  %s236, 128, %s239, %s226
        $region32: #{tpu_custom_call.1} parent=27 // pred_fallthru
          _
        // Predicated region
        $region33: #{tpu_custom_call.1} parent=27 // pred_check
          %p242 = pneg %p79
        $region34: #{tpu_custom_call.1} parent=27 // pred_check_branch
          %244 = sbr.rel (%p242) target = $region36
        $region35: #{tpu_custom_call.1} parent=27 // pred_region
          %s245 = sand.u32 %s19, 1
          %s246 = scalar_lea.sflag [#allocation7], %s245
          %s247 = sand.u32 %s69, 1
          %s248 = smul.addr %s247, 128
          %s249 = scalar_lea.vmem [#allocation6], %s248
          %s250 = smul.u32 16, %s27
          %s252 = ssub.s32 2048, 2048
          %253 = vsyncadd %s246, %s252
          %s254 = smul.addr %s250, 128
          %s255 = scalar_lea.hbm %s1, %s254
          %s256 = sshll.u32 %s249, 4
          %s257 = int_to_ptr.vmem [resolvable:$true] %s256
          %262 = dma.hbm_to_vmem [thread:$0]  %s255, 2048, %s257, %s246, 128, 128, 8
        $region36: #{tpu_custom_call.1} parent=27 // pred_fallthru
          _
      $region28: #{tpu_custom_call.1} parent=5 // pred_fallthru
        _
      %p263 = scmp.le.s32.totalorder 1, %s19
      %p264 = scmp.lt.s32.totalorder %s19, 3
      %p265 = pnand %p263, %p264
      %p266 = pneg %p265
      // Predicated region
      $region37: #{tpu_custom_call.1} parent=5 // pred_check
        _
      $region38: #{tpu_custom_call.1} parent=5 // pred_check_branch
        %268 = sbr.rel (%p265) target = $region40
      $region39: #{tpu_custom_call.1} parent=5 // pred_region
        %s269 = ssub.s32 %s19, 1
        %s270 = sand.u32 %s46, 1
        %s271 = scalar_lea.sflag [#allocation4], %s270
        %s272 = sand.u32 %s46, 1
        %s273 = smul.addr %s272, 8
        %s274 = scalar_lea.vmem [#allocation3], %s273
        // Predicated region
        $region41: #{tpu_custom_call.1} parent=39 // pred_check
          %p275 = pneg %p59
        $region42: #{tpu_custom_call.1} parent=39 // pred_check_branch
          %277 = sbr.rel (%p275) target = $region44
        $region43: #{tpu_custom_call.1} parent=39 // pred_region
          %278 = dma.done %s271, 128
        $region44: #{tpu_custom_call.1} parent=39 // pred_fallthru
          _
        %s279 = sand.u32 %s24, 1
        %s280 = scalar_lea.sflag [#allocation7], %s279
        %s281 = sand.u32 %s72, 1
        %s282 = smul.addr %s281, 128
        %s283 = scalar_lea.vmem [#allocation6], %s282
        // Predicated region
        $region45: #{tpu_custom_call.1} parent=39 // pred_check
          %p284 = pneg %p85
        $region46: #{tpu_custom_call.1} parent=39 // pred_check_branch
          %286 = sbr.rel (%p284) target = $region48
        $region47: #{tpu_custom_call.1} parent=39 // pred_region
          %287 = dma.done %s280, 2048
        $region48: #{tpu_custom_call.1} parent=39 // pred_fallthru
          _
        // Predicated region
        $region49: #{tpu_custom_call.1} parent=39 // pred_check
          %p288 = pneg %p106
        $region50: #{tpu_custom_call.1} parent=39 // pred_check_branch
          %290 = sbr.rel (%p288) target = $region52
        $region51: #{tpu_custom_call.1} parent=39 // pred_region
          %291 = dma.done [#allocation7], 2048
        $region52: #{tpu_custom_call.1} parent=39 // pred_fallthru
          _
        // Predicated region
        $region53: #{tpu_custom_call.1} parent=39 // pred_check
          %p292 = pneg %p127
        $region54: #{tpu_custom_call.1} parent=39 // pred_check_branch
          %294 = sbr.rel (%p292) target = $region56
        $region55: #{tpu_custom_call.1} parent=39 // pred_region
          %295 = dma.done [#allocation10], 2048
        $region56: #{tpu_custom_call.1} parent=39 // pred_fallthru
          _
        %s296 = sand.u32 %s46, 1
        %s297 = scalar_lea.sflag [#allocation4], %s296
        %s298 = sand.u32 %s46, 1
        %s299 = smul.addr %s298, 8
        %s300 = scalar_lea.vmem [#allocation3], %s299
        %p301 = pneg %p59
        %p302 = pneg %p56
        %s303 = sand.u32 %s24, 1
        %s304 = scalar_lea.sflag [#allocation7], %s303
        %s305 = sand.u32 %s72, 1
        %s306 = smul.addr %s305, 128
        %s307 = scalar_lea.vmem [#allocation6], %s306
        %p308 = pneg %p85
        %p309 = pneg %p82
        %p310 = pneg %p106
        %p311 = pneg %p103
        %p312 = pneg %p127
        %p313 = pneg %p124
        %p314 = pneg %p148
        %p315 = pneg %p145
        %p316 = pneg %p174
        %p317 = pneg %p171
        %s318 = smul.u32 16, %s29
        %p319 = scmp.eq.s32.totalorder %s29, 0
        // Predicated region
        $region57: #{tpu_custom_call.1} parent=39 // pred_check
          %p320 = pneg %p319
        $region58: #{tpu_custom_call.1} parent=39 // pred_check_branch
          %322 = sbr.rel (%p320) target = $region60
        $region59: #{tpu_custom_call.1} parent=39 // pred_region
          %323 = vst [vmem:[#allocation2] sm:$0xff] 0.0
        $region60: #{tpu_custom_call.1} parent=39 // pred_fallthru
          _
        %v324 = vld [vmem:[#allocation2] sm:$0xff]
        %v325 = vld [vmem:[%s274] sm:$0xff]
        %v326 = vld [vmem:[%s283] sm:$0xff]
        %v327 = vld [vmem:[%s283 + $0x8] sm:$0xff]
        %v328 = vld [vmem:[%s283 + $0x10] sm:$0xff]
        %v329 = vld [vmem:[%s283 + $0x18] sm:$0xff]
        %v330 = vld [vmem:[%s283 + $0x20] sm:$0xff]
        %v331 = vld [vmem:[%s283 + $0x28] sm:$0xff]
        %v332 = vld [vmem:[%s283 + $0x30] sm:$0xff]
        %v333 = vld [vmem:[%s283 + $0x38] sm:$0xff]
        %v334 = vld [vmem:[%s283 + $0x40] sm:$0xff]
        %v335 = vld [vmem:[%s283 + $0x48] sm:$0xff]
        %v336 = vld [vmem:[%s283 + $0x50] sm:$0xff]
        %v337 = vld [vmem:[%s283 + $0x58] sm:$0xff]
        %v338 = vld [vmem:[%s283 + $0x60] sm:$0xff]
        %v339 = vld [vmem:[%s283 + $0x68] sm:$0xff]
        %v340 = vld [vmem:[%s283 + $0x70] sm:$0xff]
        %v341 = vld [vmem:[%s283 + $0x78] sm:$0xff]
        %342 = vmatprep.subr.mxu0 0.0
        %343 = vmatpush1.msra.mxu0 %v326
        %344 = vmatprep.subr.mxu0 0.0
        %345 = vmatpush1.msra.mxu0 %v327
        %346 = vmatprep.subr.mxu0 0.0
        %347 = vmatpush1.msra.mxu0 %v328
        %348 = vmatprep.subr.mxu0 0.0
        %349 = vmatpush1.msra.mxu0 %v329
        %350 = vmatprep.subr.mxu0 0.0
        %351 = vmatpush1.msra.mxu0 %v330
        %352 = vmatprep.subr.mxu0 0.0
        %353 = vmatpush1.msra.mxu0 %v331
        %354 = vmatprep.subr.mxu0 0.0
        %355 = vmatpush1.msra.mxu0 %v332
        %356 = vmatprep.subr.mxu0 0.0
        %357 = vmatpush1.msra.mxu0 %v333
        %358 = vmatprep.subr.mxu0 0.0
        %359 = vmatpush1.msra.mxu0 %v334
        %360 = vmatprep.subr.mxu0 0.0
        %361 = vmatpush1.msra.mxu0 %v335
        %362 = vmatprep.subr.mxu0 0.0
        %363 = vmatpush1.msra.mxu0 %v336
        %364 = vmatprep.subr.mxu0 0.0
        %365 = vmatpush1.msra.mxu0 %v337
        %366 = vmatprep.subr.mxu0 0.0
        %367 = vmatpush1.msra.mxu0 %v338
        %368 = vmatprep.subr.mxu0 0.0
        %369 = vmatpush1.msra.mxu0 %v339
        %370 = vmatprep.subr.mxu0 0.0
        %371 = vmatpush1.msra.mxu0 %v340
        %372 = vmatprep.subr.mxu0 0.0
        %373 = vmatpush1.msra.mxu0 %v341
        %374 = vmatprep.subr.mxu0 0.0
        %375 = vmatpush1.msra.mxu0 0.0
        %376 = vmatprep.subr.mxu0 0.0
        %377 = vmatpush1.msra.mxu0 0.0
        %378 = vmatprep.subr.mxu0 0.0
        %379 = vmatpush1.msra.mxu0 0.0
        %380 = vmatprep.subr.mxu0 0.0
        %381 = vmatpush1.msra.mxu0 0.0
        %382 = vmatprep.subr.mxu0 0.0
        %383 = vmatpush1.msra.mxu0 0.0
        %384 = vmatprep.subr.mxu0 0.0
        %385 = vmatpush1.msra.mxu0 0.0
        %386 = vmatprep.subr.mxu0 0.0
        %387 = vmatpush1.msra.mxu0 0.0
        %388 = vmatprep.subr.mxu0 0.0
        %389 = vmatpush1.msra.mxu0 0.0
        %390 = vmatprep.subr.mxu0 0.0
        %391 = vmatpush1.msra.mxu0 0.0
        %392 = vmatprep.subr.mxu0 0.0
        %393 = vmatpush1.msra.mxu0 0.0
        %394 = vmatprep.subr.mxu0 0.0
        %395 = vmatpush1.msra.mxu0 0.0
        %396 = vmatprep.subr.mxu0 0.0
        %397 = vmatpush1.msra.mxu0 0.0
        %398 = vmatprep.subr.mxu0 0.0
        %399 = vmatpush1.msra.mxu0 0.0
        %400 = vmatprep.subr.mxu0 0.0
        %401 = vmatpush1.msra.mxu0 0.0
        %402 = vmatprep.subr.mxu0 0.0
        %403 = vmatpush1.msra.mxu0 0.0
        %404 = vmatprep.subr.mxu0 0.0
        %405 = vmatpush1.msra.mxu0 0.0
        %406 = vmatprep.mubr.f32.mxu0 0.0
        %407 = vmatmul.mubr.f32.gmra.mrb[0].mxu0 %v325
        %v408 = vpop.f32.mrb[0].mxu0
        %v409 = vadd.f32 0.0, %v408
        %v410 = vpop.f32.mrb[0].mxu0
        %411 = vdwg.mxu0
        %v412 = vadd.f32 %v324, %v409
        %413 = vst [vmem:[#allocation2] sm:$0xff] %v412
        %p414 = scmp.eq.s32.totalorder %s29, 1
        // Predicated region
        $region61: #{tpu_custom_call.1} parent=39 // pred_check
          %p415 = pneg %p414
        $region62: #{tpu_custom_call.1} parent=39 // pred_check_branch
          %417 = sbr.rel (%p415) target = $region64
        $region63: #{tpu_custom_call.1} parent=39 // pred_region
          %v418 = vld [vmem:[#allocation2] sm:$0xff]
          %v419 = vmul.f32 %v418, 0.01
          %v420 = vmax.f32 %v418, %v419
          %v421 = vld [vmem:[#allocation8] sm:$0xff]
          %v422 = vld [vmem:[#allocation8 + $0x8] sm:$0xff]
          %v423 = vld [vmem:[#allocation8 + $0x10] sm:$0xff]
          %v424 = vld [vmem:[#allocation8 + $0x18] sm:$0xff]
          %v425 = vld [vmem:[#allocation8 + $0x20] sm:$0xff]
          %v426 = vld [vmem:[#allocation8 + $0x28] sm:$0xff]
          %v427 = vld [vmem:[#allocation8 + $0x30] sm:$0xff]
          %v428 = vld [vmem:[#allocation8 + $0x38] sm:$0xff]
          %v429 = vld [vmem:[#allocation8 + $0x40] sm:$0xff]
          %v430 = vld [vmem:[#allocation8 + $0x48] sm:$0xff]
          %v431 = vld [vmem:[#allocation8 + $0x50] sm:$0xff]
          %v432 = vld [vmem:[#allocation8 + $0x58] sm:$0xff]
          %v433 = vld [vmem:[#allocation8 + $0x60] sm:$0xff]
          %v434 = vld [vmem:[#allocation8 + $0x68] sm:$0xff]
          %v435 = vld [vmem:[#allocation8 + $0x70] sm:$0xff]
          %v436 = vld [vmem:[#allocation8 + $0x78] sm:$0xff]
          %437 = vmatprep.subr.mxu0 0.0
          %438 = vmatpush1.msra.mxu0 %v421
          %439 = vmatprep.subr.mxu0 0.0
          %440 = vmatpush1.msra.mxu0 %v422
          %441 = vmatprep.subr.mxu0 0.0
          %442 = vmatpush1.msra.mxu0 %v423
          %443 = vmatprep.subr.mxu0 0.0
          %444 = vmatpush1.msra.mxu0 %v424
          %445 = vmatprep.subr.mxu0 0.0
          %446 = vmatpush1.msra.mxu0 %v425
          %447 = vmatprep.subr.mxu0 0.0
          %448 = vmatpush1.msra.mxu0 %v426
          %449 = vmatprep.subr.mxu0 0.0
          %450 = vmatpush1.msra.mxu0 %v427
          %451 = vmatprep.subr.mxu0 0.0
          %452 = vmatpush1.msra.mxu0 %v428
          %453 = vmatprep.subr.mxu0 0.0
          %454 = vmatpush1.msra.mxu0 %v429
          %455 = vmatprep.subr.mxu0 0.0
          %456 = vmatpush1.msra.mxu0 %v430
          %457 = vmatprep.subr.mxu0 0.0
          %458 = vmatpush1.msra.mxu0 %v431
          %459 = vmatprep.subr.mxu0 0.0
          %460 = vmatpush1.msra.mxu0 %v432
          %461 = vmatprep.subr.mxu0 0.0
          %462 = vmatpush1.msra.mxu0 %v433
          %463 = vmatprep.subr.mxu0 0.0
          %464 = vmatpush1.msra.mxu0 %v434
          %465 = vmatprep.subr.mxu0 0.0
          %466 = vmatpush1.msra.mxu0 %v435
          %467 = vmatprep.subr.mxu0 0.0
          %468 = vmatpush1.msra.mxu0 %v436
          %469 = vmatprep.subr.mxu0 0.0
          %470 = vmatpush1.msra.mxu0 0.0
          %471 = vmatprep.subr.mxu0 0.0
          %472 = vmatpush1.msra.mxu0 0.0
          %473 = vmatprep.subr.mxu0 0.0
          %474 = vmatpush1.msra.mxu0 0.0
          %475 = vmatprep.subr.mxu0 0.0
          %476 = vmatpush1.msra.mxu0 0.0
          %477 = vmatprep.subr.mxu0 0.0
          %478 = vmatpush1.msra.mxu0 0.0
          %479 = vmatprep.subr.mxu0 0.0
          %480 = vmatpush1.msra.mxu0 0.0
          %481 = vmatprep.subr.mxu0 0.0
          %482 = vmatpush1.msra.mxu0 0.0
          %483 = vmatprep.subr.mxu0 0.0
          %484 = vmatpush1.msra.mxu0 0.0
          %485 = vmatprep.subr.mxu0 0.0
          %486 = vmatpush1.msra.mxu0 0.0
          %487 = vmatprep.subr.mxu0 0.0
          %488 = vmatpush1.msra.mxu0 0.0
          %489 = vmatprep.subr.mxu0 0.0
          %490 = vmatpush1.msra.mxu0 0.0
          %491 = vmatprep.subr.mxu0 0.0
          %492 = vmatpush1.msra.mxu0 0.0
          %493 = vmatprep.subr.mxu0 0.0
          %494 = vmatpush1.msra.mxu0 0.0
          %495 = vmatprep.subr.mxu0 0.0
          %496 = vmatpush1.msra.mxu0 0.0
          %497 = vmatprep.subr.mxu0 0.0
          %498 = vmatpush1.msra.mxu0 0.0
          %499 = vmatprep.subr.mxu0 0.0
          %500 = vmatpush1.msra.mxu0 0.0
          %501 = vmatprep.mubr.f32.mxu0 0.0
          %502 = vmatmul.mubr.f32.gmra.mrb[0].mxu0 %v420
          %v503 = vpop.f32.mrb[0].mxu0
          %v504 = vadd.f32 0.0, %v503
          %v505 = vpop.f32.mrb[0].mxu0
          %506 = vdwg.mxu0
          %507 = vmatprep.subr.mxu0 0.0
          %508 = vmatpush1.msra.mxu0 %v421
          %509 = vmatprep.subr.mxu0 0.0
          %510 = vmatpush1.msra.mxu0 %v422
          %511 = vmatprep.subr.mxu0 0.0
          %512 = vmatpush1.msra.mxu0 %v423
          %513 = vmatprep.subr.mxu0 0.0
          %514 = vmatpush1.msra.mxu0 %v424
          %515 = vmatprep.subr.mxu0 0.0
          %516 = vmatpush1.msra.mxu0 %v425
          %517 = vmatprep.subr.mxu0 0.0
          %518 = vmatpush1.msra.mxu0 %v426
          %519 = vmatprep.subr.mxu0 0.0
          %520 = vmatpush1.msra.mxu0 %v427
          %521 = vmatprep.subr.mxu0 0.0
          %522 = vmatpush1.msra.mxu0 %v428
          %523 = vmatprep.subr.mxu0 0.0
          %524 = vmatpush1.msra.mxu0 %v429
          %525 = vmatprep.subr.mxu0 0.0
          %526 = vmatpush1.msra.mxu0 %v430
          %527 = vmatprep.subr.mxu0 0.0
          %528 = vmatpush1.msra.mxu0 %v431
          %529 = vmatprep.subr.mxu0 0.0
          %530 = vmatpush1.msra.mxu0 %v432
          %531 = vmatprep.subr.mxu0 0.0
          %532 = vmatpush1.msra.mxu0 %v433
          %533 = vmatprep.subr.mxu0 0.0
          %534 = vmatpush1.msra.mxu0 %v434
          %535 = vmatprep.subr.mxu0 0.0
          %536 = vmatpush1.msra.mxu0 %v435
          %537 = vmatprep.subr.mxu0 0.0
          %538 = vmatpush1.msra.mxu0 %v436
          %539 = vmatprep.subr.mxu0 0.0
          %540 = vmatpush1.msra.mxu0 0.0
          %541 = vmatprep.subr.mxu0 0.0
          %542 = vmatpush1.msra.mxu0 0.0
          %543 = vmatprep.subr.mxu0 0.0
          %544 = vmatpush1.msra.mxu0 0.0
          %545 = vmatprep.subr.mxu0 0.0
          %546 = vmatpush1.msra.mxu0 0.0
          %547 = vmatprep.subr.mxu0 0.0
          %548 = vmatpush1.msra.mxu0 0.0
          %549 = vmatprep.subr.mxu0 0.0
          %550 = vmatpush1.msra.mxu0 0.0
          %551 = vmatprep.subr.mxu0 0.0
          %552 = vmatpush1.msra.mxu0 0.0
          %553 = vmatprep.subr.mxu0 0.0
          %554 = vmatpush1.msra.mxu0 0.0
          %555 = vmatprep.subr.mxu0 0.0
          %556 = vmatpush1.msra.mxu0 0.0
          %557 = vmatprep.subr.mxu0 0.0
          %558 = vmatpush1.msra.mxu0 0.0
          %559 = vmatprep.subr.mxu0 0.0
          %560 = vmatpush1.msra.mxu0 0.0
          %561 = vmatprep.subr.mxu0 0.0
          %562 = vmatpush1.msra.mxu0 0.0
          %563 = vmatprep.subr.mxu0 0.0
          %564 = vmatpush1.msra.mxu0 0.0
          %565 = vmatprep.subr.mxu0 0.0
          %566 = vmatpush1.msra.mxu0 0.0
          %567 = vmatprep.subr.mxu0 0.0
          %568 = vmatpush1.msra.mxu0 0.0
          %569 = vmatprep.subr.mxu0 0.0
          %570 = vmatpush1.msra.mxu0 0.0
          %571 = vmatprep.mubr.f32.mxu0 0.0
          %572 = vmatmul.mubr.f32.gmra.mrb[0].mxu0 %v504
          %v573 = vpop.f32.mrb[0].mxu0
          %v574 = vadd.f32 0.0, %v573
          %v575 = vpop.f32.mrb[0].mxu0
          %576 = vdwg.mxu0
          %v577 = vld [vmem:[#allocation9] sm:$0xff]
          %v578 = vld [vmem:[#allocation9 + $0x8] sm:$0xff]
          %v579 = vld [vmem:[#allocation9 + $0x10] sm:$0xff]
          %v580 = vld [vmem:[#allocation9 + $0x18] sm:$0xff]
          %v581 = vld [vmem:[#allocation9 + $0x20] sm:$0xff]
          %v582 = vld [vmem:[#allocation9 + $0x28] sm:$0xff]
          %v583 = vld [vmem:[#allocation9 + $0x30] sm:$0xff]
          %v584 = vld [vmem:[#allocation9 + $0x38] sm:$0xff]
          %v585 = vld [vmem:[#allocation9 + $0x40] sm:$0xff]
          %v586 = vld [vmem:[#allocation9 + $0x48] sm:$0xff]
          %v587 = vld [vmem:[#allocation9 + $0x50] sm:$0xff]
          %v588 = vld [vmem:[#allocation9 + $0x58] sm:$0xff]
          %v589 = vld [vmem:[#allocation9 + $0x60] sm:$0xff]
          %v590 = vld [vmem:[#allocation9 + $0x68] sm:$0xff]
          %v591 = vld [vmem:[#allocation9 + $0x70] sm:$0xff]
          %v592 = vld [vmem:[#allocation9 + $0x78] sm:$0xff]
          %v593 = vld [vmem:[%s4] sm:$0x1]
          %v595 = vlaneseq
          %v596 = vshrl.u32 %v595, 7
          %v597 = vsub.s32 0, %v596
          %v598 = vrot.slane %v593, %v597
          %600 = vmatprep.subr.mxu0 0.0
          %601 = vmatpush1.msra.mxu0 %v577
          %602 = vmatprep.subr.mxu0 0.0
          %603 = vmatpush1.msra.mxu0 %v578
          %604 = vmatprep.subr.mxu0 0.0
          %605 = vmatpush1.msra.mxu0 %v579
          %606 = vmatprep.subr.mxu0 0.0
          %607 = vmatpush1.msra.mxu0 %v580
          %608 = vmatprep.subr.mxu0 0.0
          %609 = vmatpush1.msra.mxu0 %v581
          %610 = vmatprep.subr.mxu0 0.0
          %611 = vmatpush1.msra.mxu0 %v582
          %612 = vmatprep.subr.mxu0 0.0
          %613 = vmatpush1.msra.mxu0 %v583
          %614 = vmatprep.subr.mxu0 0.0
          %615 = vmatpush1.msra.mxu0 %v584
          %616 = vmatprep.subr.mxu0 0.0
          %617 = vmatpush1.msra.mxu0 %v585
          %618 = vmatprep.subr.mxu0 0.0
          %619 = vmatpush1.msra.mxu0 %v586
          %620 = vmatprep.subr.mxu0 0.0
          %621 = vmatpush1.msra.mxu0 %v587
          %622 = vmatprep.subr.mxu0 0.0
          %623 = vmatpush1.msra.mxu0 %v588
          %624 = vmatprep.subr.mxu0 0.0
          %625 = vmatpush1.msra.mxu0 %v589
          %626 = vmatprep.subr.mxu0 0.0
          %627 = vmatpush1.msra.mxu0 %v590
          %628 = vmatprep.subr.mxu0 0.0
          %629 = vmatpush1.msra.mxu0 %v591
          %630 = vmatprep.subr.mxu0 0.0
          %631 = vmatpush1.msra.mxu0 %v592
          %632 = vmatprep.subr.mxu0 0.0
          %633 = vmatpush1.msra.mxu0 0.0
          %634 = vmatprep.subr.mxu0 0.0
          %635 = vmatpush1.msra.mxu0 0.0
          %636 = vmatprep.subr.mxu0 0.0
          %637 = vmatpush1.msra.mxu0 0.0
          %638 = vmatprep.subr.mxu0 0.0
          %639 = vmatpush1.msra.mxu0 0.0
          %640 = vmatprep.subr.mxu0 0.0
          %641 = vmatpush1.msra.mxu0 0.0
          %642 = vmatprep.subr.mxu0 0.0
          %643 = vmatpush1.msra.mxu0 0.0
          %644 = vmatprep.subr.mxu0 0.0
          %645 = vmatpush1.msra.mxu0 0.0
          %646 = vmatprep.subr.mxu0 0.0
          %647 = vmatpush1.msra.mxu0 0.0
          %648 = vmatprep.subr.mxu0 0.0
          %649 = vmatpush1.msra.mxu0 0.0
          %650 = vmatprep.subr.mxu0 0.0
          %651 = vmatpush1.msra.mxu0 0.0
          %652 = vmatprep.subr.mxu0 0.0
          %653 = vmatpush1.msra.mxu0 0.0
          %654 = vmatprep.subr.mxu0 0.0
          %655 = vmatpush1.msra.mxu0 0.0
          %656 = vmatprep.subr.mxu0 0.0
          %657 = vmatpush1.msra.mxu0 0.0
          %658 = vmatprep.subr.mxu0 0.0
          %659 = vmatpush1.msra.mxu0 0.0
          %660 = vmatprep.subr.mxu0 0.0
          %661 = vmatpush1.msra.mxu0 0.0
          %662 = vmatprep.subr.mxu0 0.0
          %663 = vmatpush1.msra.mxu0 0.0
          %664 = vmatprep.mubr.f32.mxu0 0.0
          %665 = vmatmul.mubr.f32.gmra.mrb[0].mxu0 %v574
          %v666 = vpop.f32.mrb[0].mxu0
          %v667 = vadd.f32 %v598, %v666
          %v668 = vpop.f32.mrb[0].mxu0
          %669 = vdwg.mxu0
          %670 = vst [vmem:[#allocation11] sm:$0xff] %v667
        $region64: #{tpu_custom_call.1} parent=39 // pred_fallthru
          _
        // Predicated region
        $region65: #{tpu_custom_call.1} parent=39 // pred_check
          %p671 = pneg %p171
        $region66: #{tpu_custom_call.1} parent=39 // pred_check_branch
          %673 = sbr.rel (%p671) target = $region68
        $region67: #{tpu_custom_call.1} parent=39 // pred_region
          %s675 = ssub.s32 128, 128
          %676 = vsyncadd [#allocation5], %s675
          %s677 = smul.addr %s28, 128
          %s678 = scalar_lea.hbm %s5, %s677
          %s680 = sshll.u32 [#allocation11], 4
          %s681 = int_to_ptr.vmem [resolvable:$true] %s680
          %683 = dma.vmem_to_hbm [thread:$0]  %s681, 128, %s678, [#allocation5]
        $region68: #{tpu_custom_call.1} parent=39 // pred_fallthru
          _
        // Predicated region
        $region69: #{tpu_custom_call.1} parent=39 // pred_check
          %p684 = pneg %p171
        $region70: #{tpu_custom_call.1} parent=39 // pred_check_branch
          %686 = sbr.rel (%p684) target = $region72
        $region71: #{tpu_custom_call.1} parent=39 // pred_region
          %687 = dma.done [#allocation5], 128
        $region72: #{tpu_custom_call.1} parent=39 // pred_fallthru
          _
      $region40: #{tpu_custom_call.1} parent=5 // pred_fallthru
        _
      %p688 = scmp.le.s32.totalorder 2, %s19
      // Predicated region
      $region73: #{tpu_custom_call.1} parent=5 // pred_check
        %p689 = pneg %p688
      $region74: #{tpu_custom_call.1} parent=5 // pred_check_branch
        %691 = sbr.rel (%p689) target = $region76
      $region75: #{tpu_custom_call.1} parent=5 // pred_region
        %s692 = ssub.s32 %s19, 2
      $region76: #{tpu_custom_call.1} parent=5 // pred_fallthru
        _
    $region6: #{tpu_custom_call.1} parent=1 // loop_footer
      %s23 = sadd.s32 1, %s19
    $region7: #{tpu_custom_call.1} parent=1 // loop_footer_branch
      %18 = sbr.rel target = $region3
    $region8: #{tpu_custom_call.1} parent=1 // loop_exit
      _
    %693 = vsyncpa [#allocation4], 1
    %s694 = scalar_lea.sflag [#allocation4], 1
    %695 = vsyncpa %s694, 1
    %696 = vsyncpa [#allocation7], 1
    %s697 = scalar_lea.sflag [#allocation7], 1
    %698 = vsyncpa %s697, 1
    %699 = vsyncpa [#allocation10], 1
    %700 = vsyncpa [#allocation5], 1
    %s701 = scalar_lea.sflag [#allocation5], 1
    %702 = vsyncpa %s701, 1

</llo_original>
